<compile_context>
chip_gen: v5e
topology: v5e:2x2
jax: 0.10.0
libtpu: 0.0.40
codegen_flags: <defaults>
</compile_context>

<pallas_src>
import jax
import jax.numpy as jnp
from jax.experimental import pallas as pl
from jax.experimental.pallas import tpu as pltpu

LANE = 128            # lane tile width
ROW_TILE = 16         # bf16 sublane tile (16 packed rows)
MXU_TILE_N = 256      # v6e/v7x MXU native tile; block-diag fusion crossover


def _round_up(x, m):
    return ((x + m - 1) // m) * m


# ---------------------------------------------------------------------------
# Parameter packing
# ---------------------------------------------------------------------------
def pack_params(params, obs_dim, action_dim, *, mxu_tile=MXU_TILE_N):
    """Fuse the two Q-heads and pack everything into two bf16 blobs.

    Returns ((P_main, P_out), layout):
      P_main : (R, W)       bf16  layer-1 + hidden weights & biases
      P_out  : (W+16, 128)  bf16  output-head weights (lanes 0/1) + bias row
    """
    q1, q2 = params["q1"], params["q2"]
    n_lin = len(q1)
    H = q1[0][0].shape[1]
    K = obs_dim + action_dim
    Kp = _round_up(K, ROW_TILE)

    block_diag = (2 * H) <= mxu_tile
    if block_diag:
        W = max(LANE, _round_up(2 * H, LANE))
        off_q2 = H
        Hp = None
    else:
        Hp = _round_up(H, LANE)
        W = 2 * Hp
        off_q2 = Hp

    layout = dict(K=K, Kp=Kp, H=H, Hp=Hp, W=W, off_q2=off_q2,
                  block_diag=block_diag, mid=[])

    blocks = []

    def add(blk):
        rows_p = _round_up(blk.shape[0], ROW_TILE)
        if rows_p != blk.shape[0]:
            blk = jnp.pad(blk, ((0, rows_p - blk.shape[0]), (0, 0)))
        start = sum(b.shape[0] for b in blocks)
        blocks.append(blk)
        return start

    # Layer 1: one fused (Kp, W) weight; the state/action concat is done by
    # the wrapper (x zero-padded to Kp columns).
    w1a, b1a = q1[0]
    w1b, b1b = q2[0]
    w1 = jnp.zeros((Kp, W), jnp.float32)
    w1 = w1.at[:K, :H].set(w1a).at[:K, off_q2:off_q2 + H].set(w1b)
    b1 = jnp.zeros((1, W), jnp.float32)
    b1 = b1.at[0, :H].set(b1a[0]).at[0, off_q2:off_q2 + H].set(b1b[0])
    layout["w1"] = add(w1)
    layout["b1"] = add(b1)

    # Hidden layers.
    for k in range(1, n_lin - 1):
        wa, ba = q1[k]
        wb, bb_ = q2[k]
        if block_diag:
            wf = jnp.zeros((W, W), jnp.float32)
            wf = wf.at[:H, :H].set(wa).at[off_q2:off_q2 + H,
                                          off_q2:off_q2 + H].set(wb)
        else:
            # Dense per-head weights stored side by side: (Hp, 2*Hp).
            wf = jnp.zeros((Hp, W), jnp.float32)
            wf = wf.at[:H, :H].set(wa).at[:H, off_q2:off_q2 + H].set(wb)
        bf = jnp.zeros((1, W), jnp.float32)
        bf = bf.at[0, :H].set(ba[0]).at[0, off_q2:off_q2 + H].set(bb_[0])
        layout["mid"].append((add(wf), add(bf)))

    P_main = jnp.concatenate(blocks, axis=0).astype(jnp.bfloat16)

    # Output head: trimmed (W, 128) weight, only lanes 0 (q1) / 1 (q2) used;
    # bias packed as one extra 16-row tile.
    wa, ba = q1[-1]
    wb, bb_ = q2[-1]
    w3 = jnp.zeros((W, LANE), jnp.float32)
    w3 = w3.at[:H, 0].set(wa[:, 0]).at[off_q2:off_q2 + H, 1].set(wb[:, 0])
    b3 = jnp.zeros((ROW_TILE, LANE), jnp.float32)
    b3 = b3.at[0, 0].set(ba[0, 0]).at[0, 1].set(bb_[0, 0])
    P_out = jnp.concatenate([w3, b3], axis=0).astype(jnp.bfloat16)

    return (P_main, P_out), layout


# ---------------------------------------------------------------------------
# Kernel
# ---------------------------------------------------------------------------
def _make_kernel(layout):
    Kp, H, Hp, W = layout["Kp"], layout["H"], layout["Hp"], layout["W"]
    block_diag = layout["block_diag"]
    o_w1, o_b1 = layout["w1"], layout["b1"]
    mids = tuple(layout["mid"])
    f32, bf16 = jnp.float32, jnp.bfloat16

    def kernel(x_ref, p_ref, po_ref, out_ref):
        x = x_ref[...].astype(bf16)
        # Layer 1: one fused matmul covers both heads (cat(state, action) @ W1)
        h = jnp.dot(x, p_ref[o_w1:o_w1 + Kp, :], preferred_element_type=f32)
        h = h + p_ref[o_b1:o_b1 + 1, :].astype(f32)
        h = jnp.maximum(h, 0.0)

        # Hidden layers.
        for ow, ob in mids:
            if block_diag:
                # One block-diagonal matmul handles both heads.
                h = jnp.dot(h.astype(bf16), p_ref[ow:ow + W, :],
                            preferred_element_type=f32)
            else:
                # 2H exceeds the MXU tile: two dense per-head matmuls.
                h1 = jnp.dot(h[:, :Hp].astype(bf16), p_ref[ow:ow + Hp, :Hp],
                             preferred_element_type=f32)
                h2 = jnp.dot(h[:, Hp:].astype(bf16), p_ref[ow:ow + Hp, Hp:],
                             preferred_element_type=f32)
                h = jnp.concatenate([h1, h2], axis=1)
            h = h + p_ref[ob:ob + 1, :].astype(f32)
            h = jnp.maximum(h, 0.0)

        # Output head: (B, W) @ (W, 128); lane 0 = q1, lane 1 = q2, rest 0.
        q = jnp.dot(h.astype(bf16), po_ref[:W, :], preferred_element_type=f32)
        q = q + po_ref[W:W + 1, :].astype(f32)
        out_ref[...] = q          # lane-dense (bb, 128) slab -> unmasked vst

    return kernel


# ---------------------------------------------------------------------------
# Wrapper
# ---------------------------------------------------------------------------
def classic_critic_forward(state, action, packed):
    """Returns (q1, q2), each (B, 1). `packed` comes from pack_params()."""
    (P_main, P_out), layout = packed
    B = state.shape[0]
    K, Kp, W, H = layout["K"], layout["Kp"], layout["W"], layout["H"]
    n_mid = len(layout["mid"])

    # Fold torch.cat([state, action], dim=1) here; pad columns to the
    # sublane-aligned Kp so the layer-1 weight slice stays tile-aligned.
    x = jnp.concatenate([state, action], axis=1).astype(jnp.float32)
    if Kp > K:
        x = jnp.pad(x, ((0, 0), (0, Kp - K)))

    # Grid steps are serial on a TensorCore -> single step unless the batch
    # is very large.
    bb = B
    if B > 1024:
        for cand in (1024, 512, 256, 128, 64, 32, 16, 8):
            if B % cand == 0:
                bb = cand
                break
    grid = (B // bb,)

    # Logical (non-zero) work for the scheduler hint.
    flops = 2 * B * (K * 2 * H + n_mid * 2 * H * H + 2 * H * 2)
    bytes_accessed = (x.size * 4 + P_main.size * 2 + P_out.size * 2
                      + B * LANE * 4)

    # VMEM budget: double-buffered x/out tiles + resident params + activations.
    vmem_needed = (2 * (bb * Kp * 4 + bb * LANE * 4)
                   + 2 * (P_main.size + P_out.size) * 2
                   + 4 * bb * W * 4)
    vmem_limit = int(min(max(vmem_needed + (4 << 20), 32 << 20), 128 << 20))

    out = pl.pallas_call(
        _make_kernel(layout),
        out_shape=jax.ShapeDtypeStruct((B, LANE), jnp.float32),
        grid_spec=pltpu.PrefetchScalarGridSpec(
            num_scalar_prefetch=0,
            grid=grid,
            in_specs=[
                pl.BlockSpec((bb, Kp), lambda i: (i, 0)),
                # Constant index maps: packed params stay resident in VMEM
                # across all batch tiles.
                pl.BlockSpec(P_main.shape, lambda i: (0, 0)),
                pl.BlockSpec(P_out.shape, lambda i: (0, 0)),
            ],
            out_specs=pl.BlockSpec((bb, LANE), lambda i: (i, 0)),
        ),
        compiler_params=pltpu.CompilerParams(
            dimension_semantics=("parallel",),
            vmem_limit_bytes=vmem_limit),
        cost_estimate=pl.CostEstimate(
            flops=int(flops), transcendentals=0,
            bytes_accessed=int(bytes_accessed)),
    )(x, P_main, P_out)

    return out[:, 0:1], out[:, 1:2]


# ---------------------------------------------------------------------------
# Init + plain-JAX reference (unfused, head-by-head, f32) for correctness
# ---------------------------------------------------------------------------
def init_params(key, obs_dim, action_dim, hidden_dim, num_hidden_layers):
    dims = [obs_dim + action_dim] + [hidden_dim] * num_hidden_layers + [1]
    params = {}
    for head in ("q1", "q2"):
        layers = []
        for d_in, d_out in zip(dims[:-1], dims[1:]):
            key, kw, kb = jax.random.split(key, 3)
            bound = 1.0 / jnp.sqrt(d_in)
            w = jax.random.uniform(kw, (d_in, d_out), jnp.float32, -bound, bound)
            b = jax.random.uniform(kb, (1, d_out), jnp.float32, -bound, bound)
            layers.append((w, b))
        params[head] = layers
    return params


def reference_forward(state, action, params):
    x = jnp.concatenate([state, action], axis=1)

    def mlp(layers):
        h = x
        for i, (w, b) in enumerate(layers):
            h = h @ w + b
            if i < len(layers) - 1:
                h = jnp.maximum(h, 0.0)
        return h

    return mlp(params["q1"]), mlp(params["q2"])


if __name__ == "__main__":
    batch = 8
    obs_dim = 24
    action_dim = 8
    hidden_dim = 32
    num_hidden_layers = 2

    key = jax.random.PRNGKey(0)
    k_s, k_a, k_p = jax.random.split(key, 3)
    state = jax.random.normal(k_s, (batch, obs_dim), jnp.float32)
    action = jax.random.normal(k_a, (batch, action_dim), jnp.float32)
    params = init_params(k_p, obs_dim, action_dim, hidden_dim, num_hidden_layers)

    q1_ref, q2_ref = reference_forward(state, action, params)

    # bf16 weights with f32 accumulation -> loosened tolerance (intentional).
    TOL = 5e-2

    # Path 1: block-diagonal hidden fusion (2H <= MXU tile).
    packed_bd = pack_params(params, obs_dim, action_dim)
    q1, q2 = classic_critic_forward(state, action, packed_bd)
    q1 = jax.block_until_ready(q1)
    q2 = jax.block_until_ready(q2)
    assert q1.shape == (batch, 1) and q2.shape == (batch, 1)
    assert jnp.allclose(q1, q1_ref, atol=TOL, rtol=TOL)
    assert jnp.allclose(q2, q2_ref, atol=TOL, rtol=TOL)

    # Path 2: dense per-head hidden matmuls (exercised by forcing a tiny
    # "MXU tile" so 2H exceeds it; this is the large-H production path).
    packed_dense = pack_params(params, obs_dim, action_dim, mxu_tile=32)
    q1d, q2d = classic_critic_forward(state, action, packed_dense)
    q1d = jax.block_until_ready(q1d)
    q2d = jax.block_until_ready(q2d)
    assert jnp.allclose(q1d, q1_ref, atol=TOL, rtol=TOL)
    assert jnp.allclose(q2d, q2_ref, atol=TOL, rtol=TOL)

    print("KERNEL_OK")
</pallas_src>

<mosaic_0001>
module attributes {stable_mosaic.version = 11 : i64} {
  func.func @kernel(%arg0: i32, %arg1: memref<8x32xf32, #tpu.memory_space<vmem>>, %arg2: memref<192x128xbf16, #tpu.memory_space<vmem>>, %arg3: memref<144x128xbf16, #tpu.memory_space<vmem>>, %arg4: memref<8x128xf32, #tpu.memory_space<vmem>>) attributes {dimension_semantics = [#tpu.dimension_semantics<parallel>], iteration_bounds = array<i64: 1>, scalar_prefetch = 0 : i64, scratch_operands = 0 : i64, tpu.core_type = #tpu.core_type<tc>, window_params = [{transform_indices = @transform_0, window_bounds = array<i64: 8, 32>}, {pipeline_mode = #tpu.pipeline_mode<synchronous>, transform_indices = @transform_1, window_bounds = array<i64: 192, 128>}, {pipeline_mode = #tpu.pipeline_mode<synchronous>, transform_indices = @transform_2, window_bounds = array<i64: 144, 128>}, {transform_indices = @transform_3, window_bounds = array<i64: 8, 128>}]} {
    %c0 = arith.constant 0 : index
    %c0_0 = arith.constant 0 : index
    %0 = vector.load %arg1[%c0, %c0_0] : memref<8x32xf32, #tpu.memory_space<vmem>>, vector<8x32xf32>
    %1 = arith.truncf %0 : vector<8x32xf32> to vector<8x32xbf16>
    %c0_1 = arith.constant 0 : index
    %c0_2 = arith.constant 0 : index
    %2 = vector.load %arg2[%c0_1, %c0_2] : memref<192x128xbf16, #tpu.memory_space<vmem>>, vector<32x128xbf16>
    %cst = arith.constant dense<0.000000e+00> : vector<8x128xf32>
    %3 = tpu.matmul %1, %2, %cst {dimension_numbers = #tpu.dot_dimension_numbers<[1], [0], [0], [1], [0, 0, 1, 1], [], []>} : vector<8x32xbf16>, vector<32x128xbf16>, vector<8x128xf32> -> vector<8x128xf32>
    %c32 = arith.constant 32 : index
    %c0_3 = arith.constant 0 : index
    %4 = vector.load %arg2[%c32, %c0_3] : memref<192x128xbf16, #tpu.memory_space<vmem>>, vector<1x128xbf16>
    %5 = arith.extf %4 : vector<1x128xbf16> to vector<1x128xf32>
    %6 = vector.broadcast %5 : vector<1x128xf32> to vector<8x128xf32>
    %7 = arith.addf %3, %6 : vector<8x128xf32>
    %cst_4 = arith.constant 0.000000e+00 : f32
    %8 = vector.broadcast %cst_4 : f32 to vector<8x128xf32>
    %9 = arith.maximumf %7, %8 : vector<8x128xf32>
    %10 = arith.truncf %9 : vector<8x128xf32> to vector<8x128xbf16>
    %c48 = arith.constant 48 : index
    %c0_5 = arith.constant 0 : index
    %11 = vector.load %arg2[%c48, %c0_5] : memref<192x128xbf16, #tpu.memory_space<vmem>>, vector<128x128xbf16>
    %cst_6 = arith.constant dense<0.000000e+00> : vector<8x128xf32>
    %12 = tpu.matmul %10, %11, %cst_6 {dimension_numbers = #tpu.dot_dimension_numbers<[1], [0], [0], [1], [0, 0, 1, 1], [], []>} : vector<8x128xbf16>, vector<128x128xbf16>, vector<8x128xf32> -> vector<8x128xf32>
    %c176 = arith.constant 176 : index
    %c0_7 = arith.constant 0 : index
    %13 = vector.load %arg2[%c176, %c0_7] : memref<192x128xbf16, #tpu.memory_space<vmem>>, vector<1x128xbf16>
    %14 = arith.extf %13 : vector<1x128xbf16> to vector<1x128xf32>
    %15 = vector.broadcast %14 : vector<1x128xf32> to vector<8x128xf32>
    %16 = arith.addf %12, %15 : vector<8x128xf32>
    %cst_8 = arith.constant 0.000000e+00 : f32
    %17 = vector.broadcast %cst_8 : f32 to vector<8x128xf32>
    %18 = arith.maximumf %16, %17 : vector<8x128xf32>
    %19 = arith.truncf %18 : vector<8x128xf32> to vector<8x128xbf16>
    %c0_9 = arith.constant 0 : index
    %c0_10 = arith.constant 0 : index
    %20 = vector.load %arg3[%c0_9, %c0_10] : memref<144x128xbf16, #tpu.memory_space<vmem>>, vector<128x128xbf16>
    %cst_11 = arith.constant dense<0.000000e+00> : vector<8x128xf32>
    %21 = tpu.matmul %19, %20, %cst_11 {dimension_numbers = #tpu.dot_dimension_numbers<[1], [0], [0], [1], [0, 0, 1, 1], [], []>} : vector<8x128xbf16>, vector<128x128xbf16>, vector<8x128xf32> -> vector<8x128xf32>
    %c128 = arith.constant 128 : index
    %c0_12 = arith.constant 0 : index
    %22 = vector.load %arg3[%c128, %c0_12] : memref<144x128xbf16, #tpu.memory_space<vmem>>, vector<1x128xbf16>
    %23 = arith.extf %22 : vector<1x128xbf16> to vector<1x128xf32>
    %24 = vector.broadcast %23 : vector<1x128xf32> to vector<8x128xf32>
    %25 = arith.addf %21, %24 : vector<8x128xf32>
    %c0_13 = arith.constant 0 : index
    %c0_14 = arith.constant 0 : index
    %26 = vector.load %arg4[%c0_13, %c0_14] : memref<8x128xf32, #tpu.memory_space<vmem>>, vector<8x128xf32>
    tpu.vector_store %arg4[%c0_13, %c0_14], %25 {strides = array<i32>} : memref<8x128xf32, #tpu.memory_space<vmem>>, vector<8x128xf32>,
    return
  }
  func.func @transform_0(%arg0: i32) -> (i32, i32) {
    %c0_i32 = arith.constant 0 : i32
    %c0_i32_0 = arith.constant 0 : i32
    return %arg0, %c0_i32 : i32, i32
  }
  func.func @transform_1(%arg0: i32) -> (i32, i32) {
    %c0_i32 = arith.constant 0 : i32
    %c0_i32_0 = arith.constant 0 : i32
    %c0_i32_1 = arith.constant 0 : i32
    return %c0_i32, %c0_i32_0 : i32, i32
  }
  func.func @transform_2(%arg0: i32) -> (i32, i32) {
    %c0_i32 = arith.constant 0 : i32
    %c0_i32_0 = arith.constant 0 : i32
    %c0_i32_1 = arith.constant 0 : i32
    return %c0_i32, %c0_i32_0 : i32, i32
  }
  func.func @transform_3(%arg0: i32) -> (i32, i32) {
    %c0_i32 = arith.constant 0 : i32
    %c0_i32_0 = arith.constant 0 : i32
    return %arg0, %c0_i32 : i32, i32
  }
}

</mosaic_0001>

<llo_original>
// kernel: tpu_custom_call.1
$region0: #{tpu_custom_call.1}
  #allocation0 [shape = 'u32[]', space=smem, size = 0x4, offset = 0x4, fixed_abs, tag = 'smem constant byte address 0x4 - core index']
  #allocation1 [shape = 'u32[72,128]{1,0:T(1,128)}', space=vmem, size = 0x9000, scoped, tag = 'internal scratch']
  %s0 = inlined_call_operand.hbm [shape: f32[8,32], index: 0, kind: input, shape index: {}]
  %s1 = inlined_call_operand.hbm [shape: bf16[192,128], index: 1, kind: input, shape index: {}]
  %s2 = inlined_call_operand.hbm [shape: bf16[144,128], index: 2, kind: input, shape index: {}]
  %s3 = inlined_call_operand.hbm [shape: f32[8,128], index: 3, kind: output, shape index: {}]
  %s4 = sld [smem:[#allocation0]]
  $region34: #{tpu_custom_call.1} parent=0
    _
  %s6 = ssub.s32 1, %s4
  %s7 = scalar_select 0, %s6, %s4
  $region1: #{tpu_custom_call.1} parent=0
    #allocation2 [shape = 'u8[4096]{0}', space=vmem, size = 0x1000, scoped, tag = 'input window, operand 0, single buffered']
    #allocation3 [shape = 's32[1]{0}', space=sflag, size = 0x4, scoped, tag = 'scoped memory for tpu_custom_call.1']
    #allocation4 [shape = 's32[1]{0}', space=sflag, size = 0x4, scoped, tag = 'scoped memory for tpu_custom_call.1']
    #allocation5 [shape = 'u8[49152]{0}', space=vmem, size = 0xc000, scoped, tag = 'input window, operand 1, single buffered']
    #allocation6 [shape = 's32[1]{0}', space=sflag, size = 0x4, scoped, tag = 'scoped memory for tpu_custom_call.1']
    #allocation7 [shape = 'u8[36864]{0}', space=vmem, size = 0x9000, scoped, tag = 'input window, operand 2, single buffered']
    #allocation8 [shape = 'u8[4096]{0}', space=vmem, size = 0x1000, scoped, tag = 'output window, operand 0, single buffered']
    %8 = vsyncpa [#allocation3], 0
    %9 = vsyncpa [#allocation6], 0
    %10 = vsyncpa [#allocation4], 0
    // Predicated region
    $region2: #{tpu_custom_call.1} parent=1 // pred_check
      _
    $region3: #{tpu_custom_call.1} parent=1 // pred_check_branch
      %12 = sbr.rel (0) target = $region5
    $region4: #{tpu_custom_call.1} parent=1 // pred_region
      %14 = vsyncadd [#allocation3], 0
      %s16 = sshll.u32 %s0, 4
      %s17 = int_to_ptr.hbm [resolvable:$true] %s16
      %s18 = sshll.u32 [#allocation2], 4
      %s19 = int_to_ptr.vmem [resolvable:$true] %s18
      %21 = dma.hbm_to_vmem [thread:$0]  %s17, 128, %s19, [#allocation3]
    $region5: #{tpu_custom_call.1} parent=1 // pred_fallthru
      _
    // Predicated region
    $region6: #{tpu_custom_call.1} parent=1 // pred_check
      _
    $region7: #{tpu_custom_call.1} parent=1 // pred_check_branch
      %23 = sbr.rel (0) target = $region9
    $region8: #{tpu_custom_call.1} parent=1 // pred_region
      %25 = vsyncadd [#allocation6], 0
      %s26 = sshll.u32 %s1, 4
      %s27 = int_to_ptr.hbm [resolvable:$true] %s26
      %s28 = sshll.u32 [#allocation5], 4
      %s29 = int_to_ptr.vmem [resolvable:$true] %s28
      %34 = dma.hbm_to_vmem [thread:$0]  %s27, 1536, %s29, [#allocation6], 64, 64, 4
    $region9: #{tpu_custom_call.1} parent=1 // pred_fallthru
      _
    // Predicated region
    $region10: #{tpu_custom_call.1} parent=1 // pred_check
      _
    $region11: #{tpu_custom_call.1} parent=1 // pred_check_branch
      %36 = sbr.rel (0) target = $region13
    $region12: #{tpu_custom_call.1} parent=1 // pred_region
      %38 = vsyncadd [#allocation6], 0
      %s39 = sshll.u32 %s2, 4
      %s40 = int_to_ptr.hbm [resolvable:$true] %s39
      %s41 = sshll.u32 [#allocation7], 4
      %s42 = int_to_ptr.vmem [resolvable:$true] %s41
      %47 = dma.hbm_to_vmem [thread:$0]  %s40, 1152, %s42, [#allocation6], 64, 64, 4
    $region13: #{tpu_custom_call.1} parent=1 // pred_fallthru
      _
    // Predicated region
    $region14: #{tpu_custom_call.1} parent=1 // pred_check
      _
    $region15: #{tpu_custom_call.1} parent=1 // pred_check_branch
      %49 = sbr.rel (0) target = $region17
    $region16: #{tpu_custom_call.1} parent=1 // pred_region
      %51 = dma.done [#allocation3], 128
    $region17: #{tpu_custom_call.1} parent=1 // pred_fallthru
      _
    // Predicated region
    $region18: #{tpu_custom_call.1} parent=1 // pred_check
      _
    $region19: #{tpu_custom_call.1} parent=1 // pred_check_branch
      %53 = sbr.rel (0) target = $region21
    $region20: #{tpu_custom_call.1} parent=1 // pred_region
      %55 = dma.done [#allocation6], 1536
    $region21: #{tpu_custom_call.1} parent=1 // pred_fallthru
      _
    // Predicated region
    $region22: #{tpu_custom_call.1} parent=1 // pred_check
      _
    $region23: #{tpu_custom_call.1} parent=1 // pred_check_branch
      %57 = sbr.rel (0) target = $region25
    $region24: #{tpu_custom_call.1} parent=1 // pred_region
      %59 = dma.done [#allocation6], 1152
    $region25: #{tpu_custom_call.1} parent=1 // pred_fallthru
      _
    %v61 = vld [vmem:[#allocation2] sm:$0xff]
    %v62 = vpack.c.bf16 %v61, %v61
    %v63 = vld [vmem:[#allocation5] sm:$0xf]
    %v64 = vld [vmem:[#allocation5 + $0x4] sm:$0xf]
    %v65 = vld [vmem:[#allocation5 + $0x8] sm:$0xf]
    %v66 = vld [vmem:[#allocation5 + $0xc] sm:$0xf]
    %v67 = vld [vmem:[#allocation5 + $0x10] sm:$0x1]
    %v68 = vunpack.c.l.bf16 %v67
    %v69 = vperm.slane %v68, 0
    %v74 = vunpack.c.l.b16 %v63
    %v75 = vunpack.c.l.b16 %v64
    %v76 = vunpack.c.l.b16 %v65
    %v77 = vunpack.c.l.b16 %v66
    %v78 = vpack.c.b16 %v75, %v74
    %v79 = vpack.c.b16 %v77, %v76
    %vm82 = vcmask 261120
    %v84 = vsel %vm82, %v62, 0
    %86 = vmatpush.bf16.msra.mxu0 0
    %87 = vmatpush.bf16.msra.mxu0 0
    %88 = vmatpush.bf16.msra.mxu0 0
    %89 = vmatpush.bf16.msra.mxu0 0
    %90 = vmatpush.bf16.msra.mxu0 0
    %91 = vmatpush.bf16.msra.mxu0 0
    %92 = vmatpush.bf16.msra.mxu0 %v79
    %93 = vmatpush.bf16.msra.mxu0 %v78
    %94 = vmatmul.bf16.gmra.mxu0 %v84
    %v95 = vpop.f32.mrf.mxu0
    %v96 = vadd.f32 %v69, %v95
    %v97 = vpop.f32.mrf.mxu0
    %98 = vdwg.mxu0
    %v99 = vmax.f32 %v96, 0.0
    %v100 = vpack.c.bf16 %v99, %v99
    %v101 = vld [vmem:[#allocation5 + $0x18] sm:$0xf]
    %v102 = vld [vmem:[#allocation5 + $0x1c] sm:$0xf]
    %v103 = vld [vmem:[#allocation5 + $0x20] sm:$0xf]
    %v104 = vld [vmem:[#allocation5 + $0x24] sm:$0xf]
    %v105 = vld [vmem:[#allocation5 + $0x28] sm:$0xf]
    %v106 = vld [vmem:[#allocation5 + $0x2c] sm:$0xf]
    %v107 = vld [vmem:[#allocation5 + $0x30] sm:$0xf]
    %v108 = vld [vmem:[#allocation5 + $0x34] sm:$0xf]
    %v109 = vld [vmem:[#allocation5 + $0x38] sm:$0xf]
    %v110 = vld [vmem:[#allocation5 + $0x3c] sm:$0xf]
    %v111 = vld [vmem:[#allocation5 + $0x40] sm:$0xf]
    %v112 = vld [vmem:[#allocation5 + $0x44] sm:$0xf]
    %v113 = vld [vmem:[#allocation5 + $0x48] sm:$0xf]
    %v114 = vld [vmem:[#allocation5 + $0x4c] sm:$0xf]
    %v115 = vld [vmem:[#allocation5 + $0x50] sm:$0xf]
    %v116 = vld [vmem:[#allocation5 + $0x54] sm:$0xf]
    %v117 = vld [vmem:[#allocation5 + $0x58] sm:$0x1]
    %v118 = vunpack.c.l.bf16 %v117
    %v119 = vperm.slane %v118, 0
    %v136 = vunpack.c.l.b16 %v101
    %v137 = vunpack.c.l.b16 %v102
    %v138 = vunpack.c.l.b16 %v103
    %v139 = vunpack.c.l.b16 %v104
    %v140 = vunpack.c.l.b16 %v105
    %v141 = vunpack.c.l.b16 %v106
    %v142 = vunpack.c.l.b16 %v107
    %v143 = vunpack.c.l.b16 %v108
    %v144 = vunpack.c.l.b16 %v109
    %v145 = vunpack.c.l.b16 %v110
    %v146 = vunpack.c.l.b16 %v111
    %v147 = vunpack.c.l.b16 %v112
    %v148 = vunpack.c.l.b16 %v113
    %v149 = vunpack.c.l.b16 %v114
    %v150 = vunpack.c.l.b16 %v115
    %v151 = vunpack.c.l.b16 %v116
    %v152 = vpack.c.b16 %v137, %v136
    %v153 = vpack.c.b16 %v139, %v138
    %v154 = vpack.c.b16 %v141, %v140
    %v155 = vpack.c.b16 %v143, %v142
    %v156 = vpack.c.b16 %v145, %v144
    %v157 = vpack.c.b16 %v147, %v146
    %v158 = vpack.c.b16 %v149, %v148
    %v159 = vpack.c.b16 %v151, %v150
    %168 = vmatpush.bf16.msra.mxu0 %v159
    %169 = vmatpush.bf16.msra.mxu0 %v158
    %170 = vmatpush.bf16.msra.mxu0 %v157
    %171 = vmatpush.bf16.msra.mxu0 %v156
    %172 = vmatpush.bf16.msra.mxu0 %v155
    %173 = vmatpush.bf16.msra.mxu0 %v154
    %174 = vmatpush.bf16.msra.mxu0 %v153
    %175 = vmatpush.bf16.msra.mxu0 %v152
    %176 = vmatmul.bf16.gmra.mxu0 %v100
    %v177 = vpop.f32.mrf.mxu0
    %v178 = vadd.f32 %v119, %v177
    %v179 = vpop.f32.mrf.mxu0
    %180 = vdwg.mxu0
    %v181 = vmax.f32 %v178, 0.0
    %v182 = vpack.c.bf16 %v181, %v181
    %v183 = vld [vmem:[#allocation7] sm:$0xf]
    %v184 = vld [vmem:[#allocation7 + $0x4] sm:$0xf]
    %v185 = vld [vmem:[#allocation7 + $0x8] sm:$0xf]
    %v186 = vld [vmem:[#allocation7 + $0xc] sm:$0xf]
    %v187 = vld [vmem:[#allocation7 + $0x10] sm:$0xf]
    %v188 = vld [vmem:[#allocation7 + $0x14] sm:$0xf]
    %v189 = vld [vmem:[#allocation7 + $0x18] sm:$0xf]
    %v190 = vld [vmem:[#allocation7 + $0x1c] sm:$0xf]
    %v191 = vld [vmem:[#allocation7 + $0x20] sm:$0xf]
    %v192 = vld [vmem:[#allocation7 + $0x24] sm:$0xf]
    %v193 = vld [vmem:[#allocation7 + $0x28] sm:$0xf]
    %v194 = vld [vmem:[#allocation7 + $0x2c] sm:$0xf]
    %v195 = vld [vmem:[#allocation7 + $0x30] sm:$0xf]
    %v196 = vld [vmem:[#allocation7 + $0x34] sm:$0xf]
    %v197 = vld [vmem:[#allocation7 + $0x38] sm:$0xf]
    %v198 = vld [vmem:[#allocation7 + $0x3c] sm:$0xf]
    %v199 = vld [vmem:[#allocation7 + $0x40] sm:$0x1]
    %v200 = vunpack.c.l.bf16 %v199
    %v201 = vperm.slane %v200, 0
    %v218 = vunpack.c.l.b16 %v183
    %v219 = vunpack.c.l.b16 %v184
    %v220 = vunpack.c.l.b16 %v185
    %v221 = vunpack.c.l.b16 %v186
    %v222 = vunpack.c.l.b16 %v187
    %v223 = vunpack.c.l.b16 %v188
    %v224 = vunpack.c.l.b16 %v189
    %v225 = vunpack.c.l.b16 %v190
    %v226 = vunpack.c.l.b16 %v191
    %v227 = vunpack.c.l.b16 %v192
    %v228 = vunpack.c.l.b16 %v193
    %v229 = vunpack.c.l.b16 %v194
    %v230 = vunpack.c.l.b16 %v195
    %v231 = vunpack.c.l.b16 %v196
    %v232 = vunpack.c.l.b16 %v197
    %v233 = vunpack.c.l.b16 %v198
    %v234 = vpack.c.b16 %v219, %v218
    %v235 = vpack.c.b16 %v221, %v220
    %v236 = vpack.c.b16 %v223, %v222
    %v237 = vpack.c.b16 %v225, %v224
    %v238 = vpack.c.b16 %v227, %v226
    %v239 = vpack.c.b16 %v229, %v228
    %v240 = vpack.c.b16 %v231, %v230
    %v241 = vpack.c.b16 %v233, %v232
    %250 = vmatpush.bf16.msra.mxu0 %v241
    %251 = vmatpush.bf16.msra.mxu0 %v240
    %252 = vmatpush.bf16.msra.mxu0 %v239
    %253 = vmatpush.bf16.msra.mxu0 %v238
    %254 = vmatpush.bf16.msra.mxu0 %v237
    %255 = vmatpush.bf16.msra.mxu0 %v236
    %256 = vmatpush.bf16.msra.mxu0 %v235
    %257 = vmatpush.bf16.msra.mxu0 %v234
    %258 = vmatmul.bf16.gmra.mxu0 %v182
    %v259 = vpop.f32.mrf.mxu0
    %v260 = vadd.f32 %v201, %v259
    %v261 = vpop.f32.mrf.mxu0
    %262 = vdwg.mxu0
    %263 = vst [vmem:[#allocation8] sm:$0xff] %v260
    // Predicated region
    $region26: #{tpu_custom_call.1} parent=1 // pred_check
      _
    $region27: #{tpu_custom_call.1} parent=1 // pred_check_branch
      %265 = sbr.rel (0) target = $region29
    $region28: #{tpu_custom_call.1} parent=1 // pred_region
      %267 = vsyncadd [#allocation4], 0
      %s269 = sshll.u32 [#allocation8], 4
      %s270 = int_to_ptr.vmem [resolvable:$true] %s269
      %s271 = sshll.u32 %s3, 4
      %s272 = int_to_ptr.hbm [resolvable:$true] %s271
      %274 = dma.vmem_to_hbm [thread:$0]  %s270, 128, %s272, [#allocation4]
    $region29: #{tpu_custom_call.1} parent=1 // pred_fallthru
      _
    // Predicated region
    $region30: #{tpu_custom_call.1} parent=1 // pred_check
      _
    $region31: #{tpu_custom_call.1} parent=1 // pred_check_branch
      %276 = sbr.rel (0) target = $region33
    $region32: #{tpu_custom_call.1} parent=1 // pred_region
      %278 = dma.done [#allocation4], 128
    $region33: #{tpu_custom_call.1} parent=1 // pred_fallthru
      _
    %279 = vsyncpa [#allocation3], 1
    %280 = vsyncpa [#allocation6], 1
    %281 = vsyncpa [#allocation4], 1

</llo_original>
